<compile_context>
chip_gen: v7x
topology: tpu7x:2x2x1
jax: 0.10.0
libtpu: 0.0.40
codegen_flags: <defaults>
</compile_context>

<pallas_src>
import jax
import jax.numpy as jnp
from jax import lax
from jax.experimental import pallas as pl
from jax.experimental.pallas import tpu as pltpu

# --- static problem sizes (small, consistent with the module) ----------------
B = 2            # batch
C = 4            # in_channels
H = W = 16       # spatial
HW = H * W       # 256 -> lane axis everywhere in the kernel
K = 3            # 3x3 local conv
KC = K * K * C   # 36 = im2col depth
BN_EPS = 1e-5


def fusion_kernel(p_ref, gt_ref, w3_ref, b3_ref, wl_ref, wg_ref, bf_ref, out_ref):
    """Single-step kernel; channel-major layout (C on sublanes, HW on lanes).

    p_ref  : (B, KC, HW)  im2col patches of local_feat (tap-major, channel-minor)
    gt_ref : (C, B)       global_feat, transposed
    w3_ref : (C, KC)      3x3 local-conv weight (rows = out channel)
    b3_ref : (C, 1)       3x3 conv bias
    wl_ref : (C, C)       1x1 conv weight, local half, BN-folded
    wg_ref : (C, C)       1x1 conv weight, global half, BN-folded
    bf_ref : (C, 1)       1x1 conv bias with BN folded in
    out_ref: (B, C, HW)   NCHW-flattened output
    """
    # Global branch: one tiny matmul for all batches -> (C, B).
    g = jnp.dot(wg_ref[...], gt_ref[...], preferred_element_type=jnp.float32)

    for b in range(B):  # B == 2, statically unrolled; no extra grid-step overhead
        # 3x3 conv as one lane-dense matmul: (C, KC) @ (KC, HW) -> (C, HW)
        y = jnp.dot(w3_ref[...], p_ref[b], preferred_element_type=jnp.float32)
        y = jnp.maximum(y + b3_ref[...], 0.0)                      # bias + ReLU
        # 1x1 conv (local half) + per-batch global term + fused BN bias
        z = jnp.dot(wl_ref[...], y, preferred_element_type=jnp.float32)
        out_ref[b] = z + g[:, b:b + 1] + bf_ref[...]


def _im2col_nchw(x):
    """(B, C, H, W) -> (B, 9*C, H*W) patches; rows ordered (ky, kx, c_in)."""
    xp = jnp.pad(x, ((0, 0), (0, 0), (1, 1), (1, 1)))
    taps = [xp[:, :, ky:ky + H, kx:kx + W] for ky in range(K) for kx in range(K)]
    return jnp.concatenate(taps, axis=1).reshape(B, KC, HW)


def make_params(key):
    ks = jax.random.split(key, 6)

    def nrm(k, shape, scale=0.1):
        return scale * jax.random.normal(k, shape, jnp.float32)

    w_local = nrm(ks[0], (C, C, K, K))      # torch Conv2d layout (Cout, Cin, kH, kW)
    b_local = nrm(ks[1], (C,))
    w_fuse = nrm(ks[2], (C, 2 * C, 1, 1))   # 1x1 conv over concat(local, global)
    b_fuse = nrm(ks[3], (C,))
    gamma = 1.0 + nrm(ks[4], (C,))
    beta = nrm(ks[5], (C,))
    run_mean = jnp.zeros((C,), jnp.float32)
    run_var = jnp.ones((C,), jnp.float32)
    return (w_local, b_local, w_fuse, b_fuse, gamma, beta, run_mean, run_var)


def global_local_fusion(local_feat, global_feat, params):
    """local_feat (B, C, H, W) NCHW, global_feat (B, C).  Returns (B, C, H, W)."""
    w_local, b_local, w_fuse, b_fuse, gamma, beta, run_mean, run_var = params

    # --- one-time constant folds in the wrapper (free) ------------------------
    # 3x3 weight -> im2col matrix with (ky, kx, c_in) column order.
    w3 = jnp.transpose(w_local, (0, 2, 3, 1)).reshape(C, KC)
    b3 = b_local.reshape(C, 1)
    # BatchNorm (eval, running stats) folded into the 1x1 conv.
    scale = gamma / jnp.sqrt(run_var + BN_EPS)
    shift = beta - run_mean * scale
    w1 = w_fuse[:, :, 0, 0]                                   # (C, 2C)
    wl = scale[:, None] * w1[:, :C]                           # local half
    wg = scale[:, None] * w1[:, C:]                           # global half
    bf = (scale * b_fuse + shift).reshape(C, 1)

    patches = _im2col_nchw(local_feat.astype(jnp.float32))    # (B, KC, HW) dense
    gt = jnp.transpose(global_feat.astype(jnp.float32))       # (C, B)

    inputs = (patches, gt, w3, b3, wl, wg, bf)

    def full_spec(shape):
        return pl.BlockSpec(shape, lambda i, _n=len(shape): (0,) * _n)

    out = pl.pallas_call(
        fusion_kernel,
        out_shape=jax.ShapeDtypeStruct((B, C, HW), jnp.float32),
        grid_spec=pltpu.PrefetchScalarGridSpec(
            num_scalar_prefetch=0,
            grid=(1,),                                        # single step: B folded in-kernel
            in_specs=[full_spec(a.shape) for a in inputs],
            out_specs=full_spec((B, C, HW)),
        ),
        compiler_params=pltpu.CompilerParams(
            dimension_semantics=("arbitrary",)),
    )(*inputs)

    # (B, C, HW) is already NCHW-flattened -> free reshape, no transpose.
    return out.reshape(B, C, H, W)


def reference(local_feat, global_feat, params):
    """Pure-JAX reference matching the PyTorch forward (BatchNorm eval mode)."""
    w_local, b_local, w_fuse, b_fuse, gamma, beta, run_mean, run_var = params
    y = lax.conv_general_dilated(
        local_feat, w_local, window_strides=(1, 1), padding="SAME",
        dimension_numbers=("NCHW", "OIHW", "NCHW")) + b_local[None, :, None, None]
    y = jnp.maximum(y, 0.0)
    gexp = jnp.broadcast_to(global_feat[:, :, None, None], (B, C, H, W))
    feat = jnp.concatenate([y, gexp], axis=1)
    z = jnp.einsum("oi,bihw->bohw", w_fuse[:, :, 0, 0], feat) \
        + b_fuse[None, :, None, None]
    scale = gamma / jnp.sqrt(run_var + BN_EPS)
    shift = beta - run_mean * scale
    return z * scale[None, :, None, None] + shift[None, :, None, None]


if __name__ == "__main__":
    key = jax.random.PRNGKey(0)
    k1, k2, kp = jax.random.split(key, 3)
    local_feat = jax.random.normal(k1, (B, C, H, W), jnp.float32)   # NCHW like PyTorch
    global_feat = jax.random.normal(k2, (B, C), jnp.float32)
    params = make_params(kp)

    out = global_local_fusion(local_feat, global_feat, params)
    jax.block_until_ready(out)
    assert out.shape == (B, C, H, W)

    ref = reference(local_feat, global_feat, params)
    err = float(jnp.max(jnp.abs(out - ref)))
    assert err < 2e-2, f"max abs error vs reference: {err}"
    print("KERNEL_OK")
</pallas_src>

<mosaic_0001>
module attributes {stable_mosaic.version = 11 : i64} {
  func.func @fusion_kernel(%arg0: i32, %arg1: memref<2x36x256xf32, #tpu.memory_space<vmem>>, %arg2: memref<4x2xf32, #tpu.memory_space<vmem>>, %arg3: memref<4x36xf32, #tpu.memory_space<vmem>>, %arg4: memref<4x1xf32, #tpu.memory_space<vmem>>, %arg5: memref<4x4xf32, #tpu.memory_space<vmem>>, %arg6: memref<4x4xf32, #tpu.memory_space<vmem>>, %arg7: memref<4x1xf32, #tpu.memory_space<vmem>>, %arg8: memref<2x4x256xf32, #tpu.memory_space<vmem>>) attributes {dimension_semantics = [#tpu.dimension_semantics<arbitrary>], iteration_bounds = array<i64: 1>, scalar_prefetch = 0 : i64, scratch_operands = 0 : i64, tpu.core_type = #tpu.core_type<tc>, window_params = [{pipeline_mode = #tpu.pipeline_mode<synchronous>, transform_indices = @transform_0, window_bounds = array<i64: 2, 36, 256>}, {pipeline_mode = #tpu.pipeline_mode<synchronous>, transform_indices = @transform_1, window_bounds = array<i64: 4, 2>}, {pipeline_mode = #tpu.pipeline_mode<synchronous>, transform_indices = @transform_2, window_bounds = array<i64: 4, 36>}, {pipeline_mode = #tpu.pipeline_mode<synchronous>, transform_indices = @transform_3, window_bounds = array<i64: 4, 1>}, {pipeline_mode = #tpu.pipeline_mode<synchronous>, transform_indices = @transform_4, window_bounds = array<i64: 4, 4>}, {pipeline_mode = #tpu.pipeline_mode<synchronous>, transform_indices = @transform_5, window_bounds = array<i64: 4, 4>}, {pipeline_mode = #tpu.pipeline_mode<synchronous>, transform_indices = @transform_6, window_bounds = array<i64: 4, 1>}, {pipeline_mode = #tpu.pipeline_mode<synchronous>, transform_indices = @transform_7, window_bounds = array<i64: 2, 4, 256>}]} {
    %c0 = arith.constant 0 : index
    %c0_0 = arith.constant 0 : index
    %0 = vector.load %arg6[%c0, %c0_0] : memref<4x4xf32, #tpu.memory_space<vmem>>, vector<4x4xf32>
    %c0_1 = arith.constant 0 : index
    %c0_2 = arith.constant 0 : index
    %1 = vector.load %arg2[%c0_1, %c0_2] : memref<4x2xf32, #tpu.memory_space<vmem>>, vector<4x2xf32>
    %cst = arith.constant dense<0.000000e+00> : vector<4x2xf32>
    %2 = tpu.matmul %0, %1, %cst {dimension_numbers = #tpu.dot_dimension_numbers<[1], [0], [0], [1], [0, 0, 1, 1], [], []>} : vector<4x4xf32>, vector<4x2xf32>, vector<4x2xf32> -> vector<4x2xf32>
    %c0_3 = arith.constant 0 : index
    %c0_4 = arith.constant 0 : index
    %3 = vector.load %arg3[%c0_3, %c0_4] : memref<4x36xf32, #tpu.memory_space<vmem>>, vector<4x36xf32>
    %c0_5 = arith.constant 0 : index
    %c0_6 = arith.constant 0 : index
    %c0_7 = arith.constant 0 : index
    %4 = vector.load %arg1[%c0_5, %c0_6, %c0_7] : memref<2x36x256xf32, #tpu.memory_space<vmem>>, vector<1x36x256xf32>
    %5 = vector.shape_cast %4 : vector<1x36x256xf32> to vector<36x256xf32>
    %cst_8 = arith.constant dense<0.000000e+00> : vector<4x256xf32>
    %6 = tpu.matmul %3, %5, %cst_8 {dimension_numbers = #tpu.dot_dimension_numbers<[1], [0], [0], [1], [0, 0, 1, 1], [], []>} : vector<4x36xf32>, vector<36x256xf32>, vector<4x256xf32> -> vector<4x256xf32>
    %c0_9 = arith.constant 0 : index
    %c0_10 = arith.constant 0 : index
    %7 = vector.load %arg4[%c0_9, %c0_10] : memref<4x1xf32, #tpu.memory_space<vmem>>, vector<4x1xf32>
    %8 = vector.broadcast %7 : vector<4x1xf32> to vector<4x256xf32>
    %9 = arith.addf %6, %8 : vector<4x256xf32>
    %cst_11 = arith.constant 0.000000e+00 : f32
    %10 = vector.broadcast %cst_11 : f32 to vector<4x256xf32>
    %11 = arith.maximumf %9, %10 : vector<4x256xf32>
    %c0_12 = arith.constant 0 : index
    %c0_13 = arith.constant 0 : index
    %12 = vector.load %arg5[%c0_12, %c0_13] : memref<4x4xf32, #tpu.memory_space<vmem>>, vector<4x4xf32>
    %cst_14 = arith.constant dense<0.000000e+00> : vector<4x256xf32>
    %13 = tpu.matmul %12, %11, %cst_14 {dimension_numbers = #tpu.dot_dimension_numbers<[1], [0], [0], [1], [0, 0, 1, 1], [], []>} : vector<4x4xf32>, vector<4x256xf32>, vector<4x256xf32> -> vector<4x256xf32>
    %14 = vector.extract_strided_slice %2 {offsets = [0, 0], sizes = [4, 1], strides = [1, 1]} : vector<4x2xf32> to vector<4x1xf32>
    %15 = vector.broadcast %14 : vector<4x1xf32> to vector<4x256xf32>
    %16 = arith.addf %13, %15 : vector<4x256xf32>
    %c0_15 = arith.constant 0 : index
    %c0_16 = arith.constant 0 : index
    %17 = vector.load %arg7[%c0_15, %c0_16] : memref<4x1xf32, #tpu.memory_space<vmem>>, vector<4x1xf32>
    %18 = vector.broadcast %17 : vector<4x1xf32> to vector<4x256xf32>
    %19 = arith.addf %16, %18 : vector<4x256xf32>
    %c0_17 = arith.constant 0 : index
    %c0_18 = arith.constant 0 : index
    %c0_19 = arith.constant 0 : index
    %20 = vector.load %arg8[%c0_17, %c0_18, %c0_19] : memref<2x4x256xf32, #tpu.memory_space<vmem>>, vector<1x4x256xf32>
    %21 = vector.shape_cast %20 : vector<1x4x256xf32> to vector<4x256xf32>
    %22 = vector.shape_cast %19 : vector<4x256xf32> to vector<1x4x256xf32>
    tpu.vector_store %arg8[%c0_17, %c0_18, %c0_19], %22 {strides = array<i32>} : memref<2x4x256xf32, #tpu.memory_space<vmem>>, vector<1x4x256xf32>,
    %c0_20 = arith.constant 0 : index
    %c0_21 = arith.constant 0 : index
    %23 = vector.load %arg3[%c0_20, %c0_21] : memref<4x36xf32, #tpu.memory_space<vmem>>, vector<4x36xf32>
    %c1 = arith.constant 1 : index
    %c0_22 = arith.constant 0 : index
    %c0_23 = arith.constant 0 : index
    %24 = vector.load %arg1[%c1, %c0_22, %c0_23] : memref<2x36x256xf32, #tpu.memory_space<vmem>>, vector<1x36x256xf32>
    %25 = vector.shape_cast %24 : vector<1x36x256xf32> to vector<36x256xf32>
    %cst_24 = arith.constant dense<0.000000e+00> : vector<4x256xf32>
    %26 = tpu.matmul %23, %25, %cst_24 {dimension_numbers = #tpu.dot_dimension_numbers<[1], [0], [0], [1], [0, 0, 1, 1], [], []>} : vector<4x36xf32>, vector<36x256xf32>, vector<4x256xf32> -> vector<4x256xf32>
    %c0_25 = arith.constant 0 : index
    %c0_26 = arith.constant 0 : index
    %27 = vector.load %arg4[%c0_25, %c0_26] : memref<4x1xf32, #tpu.memory_space<vmem>>, vector<4x1xf32>
    %28 = vector.broadcast %27 : vector<4x1xf32> to vector<4x256xf32>
    %29 = arith.addf %26, %28 : vector<4x256xf32>
    %cst_27 = arith.constant 0.000000e+00 : f32
    %30 = vector.broadcast %cst_27 : f32 to vector<4x256xf32>
    %31 = arith.maximumf %29, %30 : vector<4x256xf32>
    %c0_28 = arith.constant 0 : index
    %c0_29 = arith.constant 0 : index
    %32 = vector.load %arg5[%c0_28, %c0_29] : memref<4x4xf32, #tpu.memory_space<vmem>>, vector<4x4xf32>
    %cst_30 = arith.constant dense<0.000000e+00> : vector<4x256xf32>
    %33 = tpu.matmul %32, %31, %cst_30 {dimension_numbers = #tpu.dot_dimension_numbers<[1], [0], [0], [1], [0, 0, 1, 1], [], []>} : vector<4x4xf32>, vector<4x256xf32>, vector<4x256xf32> -> vector<4x256xf32>
    %34 = vector.extract_strided_slice %2 {offsets = [0, 1], sizes = [4, 1], strides = [1, 1]} : vector<4x2xf32> to vector<4x1xf32>
    %35 = vector.broadcast %34 : vector<4x1xf32> to vector<4x256xf32>
    %36 = arith.addf %33, %35 : vector<4x256xf32>
    %c0_31 = arith.constant 0 : index
    %c0_32 = arith.constant 0 : index
    %37 = vector.load %arg7[%c0_31, %c0_32] : memref<4x1xf32, #tpu.memory_space<vmem>>, vector<4x1xf32>
    %38 = vector.broadcast %37 : vector<4x1xf32> to vector<4x256xf32>
    %39 = arith.addf %36, %38 : vector<4x256xf32>
    %c1_33 = arith.constant 1 : index
    %c0_34 = arith.constant 0 : index
    %c0_35 = arith.constant 0 : index
    %40 = vector.load %arg8[%c1_33, %c0_34, %c0_35] : memref<2x4x256xf32, #tpu.memory_space<vmem>>, vector<1x4x256xf32>
    %41 = vector.shape_cast %40 : vector<1x4x256xf32> to vector<4x256xf32>
    %42 = vector.shape_cast %39 : vector<4x256xf32> to vector<1x4x256xf32>
    tpu.vector_store %arg8[%c1_33, %c0_34, %c0_35], %42 {strides = array<i32>} : memref<2x4x256xf32, #tpu.memory_space<vmem>>, vector<1x4x256xf32>,
    return
  }
  func.func @transform_0(%arg0: i32) -> (i32, i32, i32) {
    %c0_i32 = arith.constant 0 : i32
    %c0_i32_0 = arith.constant 0 : i32
    %c0_i32_1 = arith.constant 0 : i32
    %c0_i32_2 = arith.constant 0 : i32
    return %c0_i32, %c0_i32_0, %c0_i32_1 : i32, i32, i32
  }
  func.func @transform_1(%arg0: i32) -> (i32, i32) {
    %c0_i32 = arith.constant 0 : i32
    %c0_i32_0 = arith.constant 0 : i32
    %c0_i32_1 = arith.constant 0 : i32
    return %c0_i32, %c0_i32_0 : i32, i32
  }
  func.func @transform_2(%arg0: i32) -> (i32, i32) {
    %c0_i32 = arith.constant 0 : i32
    %c0_i32_0 = arith.constant 0 : i32
    %c0_i32_1 = arith.constant 0 : i32
    return %c0_i32, %c0_i32_0 : i32, i32
  }
  func.func @transform_3(%arg0: i32) -> (i32, i32) {
    %c0_i32 = arith.constant 0 : i32
    %c0_i32_0 = arith.constant 0 : i32
    %c0_i32_1 = arith.constant 0 : i32
    return %c0_i32, %c0_i32_0 : i32, i32
  }
  func.func @transform_4(%arg0: i32) -> (i32, i32) {
    %c0_i32 = arith.constant 0 : i32
    %c0_i32_0 = arith.constant 0 : i32
    %c0_i32_1 = arith.constant 0 : i32
    return %c0_i32, %c0_i32_0 : i32, i32
  }
  func.func @transform_5(%arg0: i32) -> (i32, i32) {
    %c0_i32 = arith.constant 0 : i32
    %c0_i32_0 = arith.constant 0 : i32
    %c0_i32_1 = arith.constant 0 : i32
    return %c0_i32, %c0_i32_0 : i32, i32
  }
  func.func @transform_6(%arg0: i32) -> (i32, i32) {
    %c0_i32 = arith.constant 0 : i32
    %c0_i32_0 = arith.constant 0 : i32
    %c0_i32_1 = arith.constant 0 : i32
    return %c0_i32, %c0_i32_0 : i32, i32
  }
  func.func @transform_7(%arg0: i32) -> (i32, i32, i32) {
    %c0_i32 = arith.constant 0 : i32
    %c0_i32_0 = arith.constant 0 : i32
    %c0_i32_1 = arith.constant 0 : i32
    %c0_i32_2 = arith.constant 0 : i32
    return %c0_i32, %c0_i32_0, %c0_i32_1 : i32, i32, i32
  }
}

</mosaic_0001>

<llo_original>
// kernel: tpu_custom_call.1
$region0: #{tpu_custom_call.1}
  #allocation0 [shape = 'u32[]', space=smem, size = 0x4, offset = 0x4, fixed_abs, tag = 'smem constant byte address 0x4 - core index']
  #allocation1 [shape = 'u32[144,128]{1,0:T(1,128)}', space=vmem, size = 0x12000, scoped, tag = 'internal scratch']
  %s0 = inlined_call_operand.vmem [shape: f32[2,36,256], index: 0, kind: input, shape index: {}]
  %s1 = inlined_call_operand.vmem [shape: f32[4,2], index: 1, kind: input, shape index: {}]
  %s2 = inlined_call_operand.vmem [shape: f32[4,36], index: 2, kind: input, shape index: {}]
  %s3 = inlined_call_operand.vmem [shape: f32[4,1], index: 3, kind: input, shape index: {}]
  %s4 = inlined_call_operand.vmem [shape: f32[4,4], index: 4, kind: input, shape index: {}]
  %s5 = inlined_call_operand.vmem [shape: f32[4,4], index: 5, kind: input, shape index: {}]
  %s6 = inlined_call_operand.vmem [shape: f32[4,1], index: 6, kind: input, shape index: {}]
  %s7 = inlined_call_operand.hbm [shape: f32[2,4,256], index: 7, kind: output, shape index: {}]
  %s8 = sld [smem:[#allocation0]]
  $region38: #{tpu_custom_call.1} parent=0
    _
  %s10 = ssub.s32 1, %s8
  %s11 = scalar_select 0, %s10, %s8
  $region1: #{tpu_custom_call.1} parent=0
    #allocation2 [shape = 'u8[8192]{0}', space=vmem, size = 0x2000, scoped, tag = 'output window, operand 0, single buffered']
    #allocation3 [shape = 's32[1]{0}', space=sflag, size = 0x4, scoped, tag = 'scoped memory for tpu_custom_call.1']
    %12 = vsyncpa [#allocation3], 0
    // Predicated region
    $region2: #{tpu_custom_call.1} parent=1 // pred_check
      _
    $region3: #{tpu_custom_call.1} parent=1 // pred_check_branch
      %14 = sbr.rel (0) target = $region5
    $region4: #{tpu_custom_call.1} parent=1 // pred_region
      _
    $region5: #{tpu_custom_call.1} parent=1 // pred_fallthru
      _
    // Predicated region
    $region6: #{tpu_custom_call.1} parent=1 // pred_check
      _
    $region7: #{tpu_custom_call.1} parent=1 // pred_check_branch
      %16 = sbr.rel (0) target = $region9
    $region8: #{tpu_custom_call.1} parent=1 // pred_region
      _
    $region9: #{tpu_custom_call.1} parent=1 // pred_fallthru
      _
    // Predicated region
    $region10: #{tpu_custom_call.1} parent=1 // pred_check
      _
    $region11: #{tpu_custom_call.1} parent=1 // pred_check_branch
      %18 = sbr.rel (0) target = $region13
    $region12: #{tpu_custom_call.1} parent=1 // pred_region
      _
    $region13: #{tpu_custom_call.1} parent=1 // pred_fallthru
      _
    // Predicated region
    $region14: #{tpu_custom_call.1} parent=1 // pred_check
      _
    $region15: #{tpu_custom_call.1} parent=1 // pred_check_branch
      %20 = sbr.rel (0) target = $region17
    $region16: #{tpu_custom_call.1} parent=1 // pred_region
      _
    $region17: #{tpu_custom_call.1} parent=1 // pred_fallthru
      _
    // Predicated region
    $region18: #{tpu_custom_call.1} parent=1 // pred_check
      _
    $region19: #{tpu_custom_call.1} parent=1 // pred_check_branch
      %22 = sbr.rel (0) target = $region21
    $region20: #{tpu_custom_call.1} parent=1 // pred_region
      _
    $region21: #{tpu_custom_call.1} parent=1 // pred_fallthru
      _
    // Predicated region
    $region22: #{tpu_custom_call.1} parent=1 // pred_check
      _
    $region23: #{tpu_custom_call.1} parent=1 // pred_check_branch
      %24 = sbr.rel (0) target = $region25
    $region24: #{tpu_custom_call.1} parent=1 // pred_region
      _
    $region25: #{tpu_custom_call.1} parent=1 // pred_fallthru
      _
    // Predicated region
    $region26: #{tpu_custom_call.1} parent=1 // pred_check
      _
    $region27: #{tpu_custom_call.1} parent=1 // pred_check_branch
      %26 = sbr.rel (0) target = $region29
    $region28: #{tpu_custom_call.1} parent=1 // pred_region
      _
    $region29: #{tpu_custom_call.1} parent=1 // pred_fallthru
      _
    %v27 = vld [vmem:[%s5] sm:$0xf]
    %v28 = vld [vmem:[%s1] sm:$0xf]
    %vm29 = vcmask 31744
    %v31 = vsel %vm29, %v27, 0
    %vm33 = vcmask 1043456
    %v35 = vsel %vm33, %v28, 0
    %37 = vmatprep.subr.mxu0 0.0
    %38 = vmatpush1.msra.mxu0 %v35
    %39 = vmatprep.subr.mxu0 0.0
    %40 = vmatpush1.msra.mxu0 0.0
    %41 = vmatprep.subr.mxu0 0.0
    %42 = vmatpush1.msra.mxu0 0.0
    %43 = vmatprep.subr.mxu0 0.0
    %44 = vmatpush1.msra.mxu0 0.0
    %45 = vmatprep.subr.mxu0 0.0
    %46 = vmatpush1.msra.mxu0 0.0
    %47 = vmatprep.subr.mxu0 0.0
    %48 = vmatpush1.msra.mxu0 0.0
    %49 = vmatprep.subr.mxu0 0.0
    %50 = vmatpush1.msra.mxu0 0.0
    %51 = vmatprep.subr.mxu0 0.0
    %52 = vmatpush1.msra.mxu0 0.0
    %53 = vmatprep.subr.mxu0 0.0
    %54 = vmatpush1.msra.mxu0 0.0
    %55 = vmatprep.subr.mxu0 0.0
    %56 = vmatpush1.msra.mxu0 0.0
    %57 = vmatprep.subr.mxu0 0.0
    %58 = vmatpush1.msra.mxu0 0.0
    %59 = vmatprep.subr.mxu0 0.0
    %60 = vmatpush1.msra.mxu0 0.0
    %61 = vmatprep.subr.mxu0 0.0
    %62 = vmatpush1.msra.mxu0 0.0
    %63 = vmatprep.subr.mxu0 0.0
    %64 = vmatpush1.msra.mxu0 0.0
    %65 = vmatprep.subr.mxu0 0.0
    %66 = vmatpush1.msra.mxu0 0.0
    %67 = vmatprep.subr.mxu0 0.0
    %68 = vmatpush1.msra.mxu0 0.0
    %69 = vmatprep.subr.mxu0 0.0
    %70 = vmatpush1.msra.mxu0 0.0
    %71 = vmatprep.subr.mxu0 0.0
    %72 = vmatpush1.msra.mxu0 0.0
    %73 = vmatprep.subr.mxu0 0.0
    %74 = vmatpush1.msra.mxu0 0.0
    %75 = vmatprep.subr.mxu0 0.0
    %76 = vmatpush1.msra.mxu0 0.0
    %77 = vmatprep.subr.mxu0 0.0
    %78 = vmatpush1.msra.mxu0 0.0
    %79 = vmatprep.subr.mxu0 0.0
    %80 = vmatpush1.msra.mxu0 0.0
    %81 = vmatprep.subr.mxu0 0.0
    %82 = vmatpush1.msra.mxu0 0.0
    %83 = vmatprep.subr.mxu0 0.0
    %84 = vmatpush1.msra.mxu0 0.0
    %85 = vmatprep.subr.mxu0 0.0
    %86 = vmatpush1.msra.mxu0 0.0
    %87 = vmatprep.subr.mxu0 0.0
    %88 = vmatpush1.msra.mxu0 0.0
    %89 = vmatprep.subr.mxu0 0.0
    %90 = vmatpush1.msra.mxu0 0.0
    %91 = vmatprep.subr.mxu0 0.0
    %92 = vmatpush1.msra.mxu0 0.0
    %93 = vmatprep.subr.mxu0 0.0
    %94 = vmatpush1.msra.mxu0 0.0
    %95 = vmatprep.subr.mxu0 0.0
    %96 = vmatpush1.msra.mxu0 0.0
    %97 = vmatprep.subr.mxu0 0.0
    %98 = vmatpush1.msra.mxu0 0.0
    %99 = vmatprep.subr.mxu0 0.0
    %100 = vmatpush1.msra.mxu0 0.0
    %101 = vmatprep.mubr.f32.mxu0 0.0
    %102 = vmatmul.mubr.f32.gmra.mrb[0].mxu0 %v31
    %v103 = vpop.f32.mrb[0].mxu0
    %v104 = vadd.f32 0.0, %v103
    %v105 = vpop.f32.mrb[0].mxu0
    %106 = vdwg.mxu0
    %v107 = vld [vmem:[%s2] sm:$0xf]
    %v108 = vld [vmem:[%s0] sm:$0xff]
    %v109 = vld [vmem:[%s0 + $0x8] sm:$0xff]
    %v110 = vld [vmem:[%s0 + $0x10] sm:$0xff]
    %v111 = vld [vmem:[%s0 + $0x18] sm:$0xff]
    %v112 = vld [vmem:[%s0 + $0x20] sm:$0xff]
    %v113 = vld [vmem:[%s0 + $0x28] sm:$0xff]
    %v114 = vld [vmem:[%s0 + $0x30] sm:$0xff]
    %v115 = vld [vmem:[%s0 + $0x38] sm:$0xff]
    %v116 = vld [vmem:[%s0 + $0x40] sm:$0xf]
    %v117 = vld [vmem:[%s0 + $0x48] sm:$0xf]
    %v118 = vld [vmem:[%s3] sm:$0xf]
    %120 = vset.pattern.permute.xlu0 0
    %121 = vperm.xlu0 %120, %v118
    %v122 = vpop.permute.xlu0 %121
    %vm124 = vcmask 293888
    %v126 = vsel %vm124, %v107, 0
    %v129 = vsel %vm33, %v116, 0
    %v132 = vsel %vm33, %v117, 0
    %134 = vmatprep.subr.mxu0 %v109
    %135 = vmatpush1.msra.mxu0 %v108
    %136 = vmatprep.subr.mxu0 %v111
    %137 = vmatpush1.msra.mxu0 %v110
    %138 = vmatprep.subr.mxu0 %v113
    %139 = vmatpush1.msra.mxu0 %v112
    %140 = vmatprep.subr.mxu0 %v115
    %141 = vmatpush1.msra.mxu0 %v114
    %142 = vmatprep.subr.mxu0 %v132
    %143 = vmatpush1.msra.mxu0 %v129
    %144 = vmatprep.subr.mxu0 0.0
    %145 = vmatpush1.msra.mxu0 0.0
    %146 = vmatprep.subr.mxu0 0.0
    %147 = vmatpush1.msra.mxu0 0.0
    %148 = vmatprep.subr.mxu0 0.0
    %149 = vmatpush1.msra.mxu0 0.0
    %150 = vmatprep.subr.mxu0 0.0
    %151 = vmatpush1.msra.mxu0 0.0
    %152 = vmatprep.subr.mxu0 0.0
    %153 = vmatpush1.msra.mxu0 0.0
    %154 = vmatprep.subr.mxu0 0.0
    %155 = vmatpush1.msra.mxu0 0.0
    %156 = vmatprep.subr.mxu0 0.0
    %157 = vmatpush1.msra.mxu0 0.0
    %158 = vmatprep.subr.mxu0 0.0
    %159 = vmatpush1.msra.mxu0 0.0
    %160 = vmatprep.subr.mxu0 0.0
    %161 = vmatpush1.msra.mxu0 0.0
    %162 = vmatprep.subr.mxu0 0.0
    %163 = vmatpush1.msra.mxu0 0.0
    %164 = vmatprep.subr.mxu0 0.0
    %165 = vmatpush1.msra.mxu0 0.0
    %166 = vmatprep.subr.mxu0 0.0
    %167 = vmatpush1.msra.mxu0 0.0
    %168 = vmatprep.subr.mxu0 0.0
    %169 = vmatpush1.msra.mxu0 0.0
    %170 = vmatprep.subr.mxu0 0.0
    %171 = vmatpush1.msra.mxu0 0.0
    %172 = vmatprep.subr.mxu0 0.0
    %173 = vmatpush1.msra.mxu0 0.0
    %174 = vmatprep.subr.mxu0 0.0
    %175 = vmatpush1.msra.mxu0 0.0
    %176 = vmatprep.subr.mxu0 0.0
    %177 = vmatpush1.msra.mxu0 0.0
    %178 = vmatprep.subr.mxu0 0.0
    %179 = vmatpush1.msra.mxu0 0.0
    %180 = vmatprep.subr.mxu0 0.0
    %181 = vmatpush1.msra.mxu0 0.0
    %182 = vmatprep.subr.mxu0 0.0
    %183 = vmatpush1.msra.mxu0 0.0
    %184 = vmatprep.subr.mxu0 0.0
    %185 = vmatpush1.msra.mxu0 0.0
    %186 = vmatprep.subr.mxu0 0.0
    %187 = vmatpush1.msra.mxu0 0.0
    %188 = vmatprep.subr.mxu0 0.0
    %189 = vmatpush1.msra.mxu0 0.0
    %190 = vmatprep.subr.mxu0 0.0
    %191 = vmatpush1.msra.mxu0 0.0
    %192 = vmatprep.subr.mxu0 0.0
    %193 = vmatpush1.msra.mxu0 0.0
    %194 = vmatprep.subr.mxu0 0.0
    %195 = vmatpush1.msra.mxu0 0.0
    %196 = vmatprep.subr.mxu0 0.0
    %197 = vmatpush1.msra.mxu0 0.0
    %198 = vmatprep.mubr.f32.mxu0 0.0
    %199 = vmatmul.mubr.f32.gmra.mrb[0].mxu0 %v126
    %v200 = vpop.f32.mrb[0].mxu0
    %v201 = vadd.f32 %v122, %v200
    %v202 = vpop.f32.mrb[0].mxu0
    %v203 = vadd.f32 %v122, %v202
    %204 = vdwg.mxu0
    %v205 = vmax.f32 %v201, 0.0
    %v206 = vmax.f32 %v203, 0.0
    %v207 = vld [vmem:[%s4] sm:$0xf]
    %209 = vset.pattern.permute.xlu0 0
    %210 = vperm.xlu0 %209, %v104
    %v211 = vpop.permute.xlu0 %210
    %v214 = vsel %vm29, %v207, 0
    %v217 = vsel %vm33, %v205, 0
    %v220 = vsel %vm33, %v206, 0
    %222 = vmatprep.subr.mxu0 %v220
    %223 = vmatpush1.msra.mxu0 %v217
    %224 = vmatprep.subr.mxu0 0.0
    %225 = vmatpush1.msra.mxu0 0.0
    %226 = vmatprep.subr.mxu0 0.0
    %227 = vmatpush1.msra.mxu0 0.0
    %228 = vmatprep.subr.mxu0 0.0
    %229 = vmatpush1.msra.mxu0 0.0
    %230 = vmatprep.subr.mxu0 0.0
    %231 = vmatpush1.msra.mxu0 0.0
    %232 = vmatprep.subr.mxu0 0.0
    %233 = vmatpush1.msra.mxu0 0.0
    %234 = vmatprep.subr.mxu0 0.0
    %235 = vmatpush1.msra.mxu0 0.0
    %236 = vmatprep.subr.mxu0 0.0
    %237 = vmatpush1.msra.mxu0 0.0
    %238 = vmatprep.subr.mxu0 0.0
    %239 = vmatpush1.msra.mxu0 0.0
    %240 = vmatprep.subr.mxu0 0.0
    %241 = vmatpush1.msra.mxu0 0.0
    %242 = vmatprep.subr.mxu0 0.0
    %243 = vmatpush1.msra.mxu0 0.0
    %244 = vmatprep.subr.mxu0 0.0
    %245 = vmatpush1.msra.mxu0 0.0
    %246 = vmatprep.subr.mxu0 0.0
    %247 = vmatpush1.msra.mxu0 0.0
    %248 = vmatprep.subr.mxu0 0.0
    %249 = vmatpush1.msra.mxu0 0.0
    %250 = vmatprep.subr.mxu0 0.0
    %251 = vmatpush1.msra.mxu0 0.0
    %252 = vmatprep.subr.mxu0 0.0
    %253 = vmatpush1.msra.mxu0 0.0
    %254 = vmatprep.subr.mxu0 0.0
    %255 = vmatpush1.msra.mxu0 0.0
    %256 = vmatprep.subr.mxu0 0.0
    %257 = vmatpush1.msra.mxu0 0.0
    %258 = vmatprep.subr.mxu0 0.0
    %259 = vmatpush1.msra.mxu0 0.0
    %260 = vmatprep.subr.mxu0 0.0
    %261 = vmatpush1.msra.mxu0 0.0
    %262 = vmatprep.subr.mxu0 0.0
    %263 = vmatpush1.msra.mxu0 0.0
    %264 = vmatprep.subr.mxu0 0.0
    %265 = vmatpush1.msra.mxu0 0.0
    %266 = vmatprep.subr.mxu0 0.0
    %267 = vmatpush1.msra.mxu0 0.0
    %268 = vmatprep.subr.mxu0 0.0
    %269 = vmatpush1.msra.mxu0 0.0
    %270 = vmatprep.subr.mxu0 0.0
    %271 = vmatpush1.msra.mxu0 0.0
    %272 = vmatprep.subr.mxu0 0.0
    %273 = vmatpush1.msra.mxu0 0.0
    %274 = vmatprep.subr.mxu0 0.0
    %275 = vmatpush1.msra.mxu0 0.0
    %276 = vmatprep.subr.mxu0 0.0
    %277 = vmatpush1.msra.mxu0 0.0
    %278 = vmatprep.subr.mxu0 0.0
    %279 = vmatpush1.msra.mxu0 0.0
    %280 = vmatprep.subr.mxu0 0.0
    %281 = vmatpush1.msra.mxu0 0.0
    %282 = vmatprep.subr.mxu0 0.0
    %283 = vmatpush1.msra.mxu0 0.0
    %284 = vmatprep.subr.mxu0 0.0
    %285 = vmatpush1.msra.mxu0 0.0
    %286 = vmatprep.mubr.f32.mxu0 0.0
    %287 = vmatmul.mubr.f32.gmra.mrb[0].mxu0 %v214
    %v288 = vpop.f32.mrb[0].mxu0
    %v289 = vadd.f32 %v211, %v288
    %v290 = vpop.f32.mrb[0].mxu0
    %v291 = vadd.f32 %v211, %v290
    %292 = vdwg.mxu0
    %v293 = vld [vmem:[%s6] sm:$0xf]
    %295 = vset.pattern.permute.xlu0 0
    %296 = vperm.xlu0 %295, %v293
    %v297 = vpop.permute.xlu0 %296
    %v299 = vadd.f32 %v289, %v297
    %v300 = vadd.f32 %v291, %v297
    %v303 = vcombine.low %v299, %v300
    %305 = vst [vmem:[#allocation2] sm:$0xff] %v303
    %v306 = vld [vmem:[%s2] sm:$0xf]
    %s307 = scalar_lea.vmem %s0, 80
    %v308 = vld [vmem:[%s307] sm:$0xff]
    %v309 = vld [vmem:[%s307 + $0x8] sm:$0xff]
    %v310 = vld [vmem:[%s307 + $0x10] sm:$0xff]
    %v311 = vld [vmem:[%s307 + $0x18] sm:$0xff]
    %v312 = vld [vmem:[%s307 + $0x20] sm:$0xff]
    %v313 = vld [vmem:[%s307 + $0x28] sm:$0xff]
    %v314 = vld [vmem:[%s307 + $0x30] sm:$0xff]
    %v315 = vld [vmem:[%s307 + $0x38] sm:$0xff]
    %v316 = vld [vmem:[%s307 + $0x40] sm:$0xf]
    %v317 = vld [vmem:[%s307 + $0x48] sm:$0xf]
    %v318 = vld [vmem:[%s3] sm:$0xf]
    %320 = vset.pattern.permute.xlu0 0
    %321 = vperm.xlu0 %320, %v318
    %v322 = vpop.permute.xlu0 %321
    %v325 = vsel %vm124, %v306, 0
    %v328 = vsel %vm33, %v316, 0
    %v331 = vsel %vm33, %v317, 0
    %333 = vmatprep.subr.mxu0 %v309
    %334 = vmatpush1.msra.mxu0 %v308
    %335 = vmatprep.subr.mxu0 %v311
    %336 = vmatpush1.msra.mxu0 %v310
    %337 = vmatprep.subr.mxu0 %v313
    %338 = vmatpush1.msra.mxu0 %v312
    %339 = vmatprep.subr.mxu0 %v315
    %340 = vmatpush1.msra.mxu0 %v314
    %341 = vmatprep.subr.mxu0 %v331
    %342 = vmatpush1.msra.mxu0 %v328
    %343 = vmatprep.subr.mxu0 0.0
    %344 = vmatpush1.msra.mxu0 0.0
    %345 = vmatprep.subr.mxu0 0.0
    %346 = vmatpush1.msra.mxu0 0.0
    %347 = vmatprep.subr.mxu0 0.0
    %348 = vmatpush1.msra.mxu0 0.0
    %349 = vmatprep.subr.mxu0 0.0
    %350 = vmatpush1.msra.mxu0 0.0
    %351 = vmatprep.subr.mxu0 0.0
    %352 = vmatpush1.msra.mxu0 0.0
    %353 = vmatprep.subr.mxu0 0.0
    %354 = vmatpush1.msra.mxu0 0.0
    %355 = vmatprep.subr.mxu0 0.0
    %356 = vmatpush1.msra.mxu0 0.0
    %357 = vmatprep.subr.mxu0 0.0
    %358 = vmatpush1.msra.mxu0 0.0
    %359 = vmatprep.subr.mxu0 0.0
    %360 = vmatpush1.msra.mxu0 0.0
    %361 = vmatprep.subr.mxu0 0.0
    %362 = vmatpush1.msra.mxu0 0.0
    %363 = vmatprep.subr.mxu0 0.0
    %364 = vmatpush1.msra.mxu0 0.0
    %365 = vmatprep.subr.mxu0 0.0
    %366 = vmatpush1.msra.mxu0 0.0
    %367 = vmatprep.subr.mxu0 0.0
    %368 = vmatpush1.msra.mxu0 0.0
    %369 = vmatprep.subr.mxu0 0.0
    %370 = vmatpush1.msra.mxu0 0.0
    %371 = vmatprep.subr.mxu0 0.0
    %372 = vmatpush1.msra.mxu0 0.0
    %373 = vmatprep.subr.mxu0 0.0
    %374 = vmatpush1.msra.mxu0 0.0
    %375 = vmatprep.subr.mxu0 0.0
    %376 = vmatpush1.msra.mxu0 0.0
    %377 = vmatprep.subr.mxu0 0.0
    %378 = vmatpush1.msra.mxu0 0.0
    %379 = vmatprep.subr.mxu0 0.0
    %380 = vmatpush1.msra.mxu0 0.0
    %381 = vmatprep.subr.mxu0 0.0
    %382 = vmatpush1.msra.mxu0 0.0
    %383 = vmatprep.subr.mxu0 0.0
    %384 = vmatpush1.msra.mxu0 0.0
    %385 = vmatprep.subr.mxu0 0.0
    %386 = vmatpush1.msra.mxu0 0.0
    %387 = vmatprep.subr.mxu0 0.0
    %388 = vmatpush1.msra.mxu0 0.0
    %389 = vmatprep.subr.mxu0 0.0
    %390 = vmatpush1.msra.mxu0 0.0
    %391 = vmatprep.subr.mxu0 0.0
    %392 = vmatpush1.msra.mxu0 0.0
    %393 = vmatprep.subr.mxu0 0.0
    %394 = vmatpush1.msra.mxu0 0.0
    %395 = vmatprep.subr.mxu0 0.0
    %396 = vmatpush1.msra.mxu0 0.0
    %397 = vmatprep.mubr.f32.mxu0 0.0
    %398 = vmatmul.mubr.f32.gmra.mrb[0].mxu0 %v325
    %v399 = vpop.f32.mrb[0].mxu0
    %v400 = vadd.f32 %v322, %v399
    %v401 = vpop.f32.mrb[0].mxu0
    %v402 = vadd.f32 %v322, %v401
    %403 = vdwg.mxu0
    %v404 = vmax.f32 %v400, 0.0
    %v405 = vmax.f32 %v402, 0.0
    %v406 = vld [vmem:[%s4] sm:$0xf]
    %407 = vset.pattern.permute.xlu0 1
    %408 = vperm.xlu0 %407, %v104
    %v409 = vpop.permute.xlu0 %408
    %v412 = vsel %vm29, %v406, 0
    %v415 = vsel %vm33, %v404, 0
    %v418 = vsel %vm33, %v405, 0
    %420 = vmatprep.subr.mxu0 %v418
    %421 = vmatpush1.msra.mxu0 %v415
    %422 = vmatprep.subr.mxu0 0.0
    %423 = vmatpush1.msra.mxu0 0.0
    %424 = vmatprep.subr.mxu0 0.0
    %425 = vmatpush1.msra.mxu0 0.0
    %426 = vmatprep.subr.mxu0 0.0
    %427 = vmatpush1.msra.mxu0 0.0
    %428 = vmatprep.subr.mxu0 0.0
    %429 = vmatpush1.msra.mxu0 0.0
    %430 = vmatprep.subr.mxu0 0.0
    %431 = vmatpush1.msra.mxu0 0.0
    %432 = vmatprep.subr.mxu0 0.0
    %433 = vmatpush1.msra.mxu0 0.0
    %434 = vmatprep.subr.mxu0 0.0
    %435 = vmatpush1.msra.mxu0 0.0
    %436 = vmatprep.subr.mxu0 0.0
    %437 = vmatpush1.msra.mxu0 0.0
    %438 = vmatprep.subr.mxu0 0.0
    %439 = vmatpush1.msra.mxu0 0.0
    %440 = vmatprep.subr.mxu0 0.0
    %441 = vmatpush1.msra.mxu0 0.0
    %442 = vmatprep.subr.mxu0 0.0
    %443 = vmatpush1.msra.mxu0 0.0
    %444 = vmatprep.subr.mxu0 0.0
    %445 = vmatpush1.msra.mxu0 0.0
    %446 = vmatprep.subr.mxu0 0.0
    %447 = vmatpush1.msra.mxu0 0.0
    %448 = vmatprep.subr.mxu0 0.0
    %449 = vmatpush1.msra.mxu0 0.0
    %450 = vmatprep.subr.mxu0 0.0
    %451 = vmatpush1.msra.mxu0 0.0
    %452 = vmatprep.subr.mxu0 0.0
    %453 = vmatpush1.msra.mxu0 0.0
    %454 = vmatprep.subr.mxu0 0.0
    %455 = vmatpush1.msra.mxu0 0.0
    %456 = vmatprep.subr.mxu0 0.0
    %457 = vmatpush1.msra.mxu0 0.0
    %458 = vmatprep.subr.mxu0 0.0
    %459 = vmatpush1.msra.mxu0 0.0
    %460 = vmatprep.subr.mxu0 0.0
    %461 = vmatpush1.msra.mxu0 0.0
    %462 = vmatprep.subr.mxu0 0.0
    %463 = vmatpush1.msra.mxu0 0.0
    %464 = vmatprep.subr.mxu0 0.0
    %465 = vmatpush1.msra.mxu0 0.0
    %466 = vmatprep.subr.mxu0 0.0
    %467 = vmatpush1.msra.mxu0 0.0
    %468 = vmatprep.subr.mxu0 0.0
    %469 = vmatpush1.msra.mxu0 0.0
    %470 = vmatprep.subr.mxu0 0.0
    %471 = vmatpush1.msra.mxu0 0.0
    %472 = vmatprep.subr.mxu0 0.0
    %473 = vmatpush1.msra.mxu0 0.0
    %474 = vmatprep.subr.mxu0 0.0
    %475 = vmatpush1.msra.mxu0 0.0
    %476 = vmatprep.subr.mxu0 0.0
    %477 = vmatpush1.msra.mxu0 0.0
    %478 = vmatprep.subr.mxu0 0.0
    %479 = vmatpush1.msra.mxu0 0.0
    %480 = vmatprep.subr.mxu0 0.0
    %481 = vmatpush1.msra.mxu0 0.0
    %482 = vmatprep.subr.mxu0 0.0
    %483 = vmatpush1.msra.mxu0 0.0
    %484 = vmatprep.mubr.f32.mxu0 0.0
    %485 = vmatmul.mubr.f32.gmra.mrb[0].mxu0 %v412
    %v486 = vpop.f32.mrb[0].mxu0
    %v487 = vadd.f32 %v409, %v486
    %v488 = vpop.f32.mrb[0].mxu0
    %v489 = vadd.f32 %v409, %v488
    %490 = vdwg.mxu0
    %v491 = vld [vmem:[%s6] sm:$0xf]
    %493 = vset.pattern.permute.xlu0 0
    %494 = vperm.xlu0 %493, %v491
    %v495 = vpop.permute.xlu0 %494
    %v497 = vadd.f32 %v487, %v495
    %v498 = vadd.f32 %v489, %v495
    %v501 = vcombine.low %v497, %v498
    %s503 = scalar_lea.vmem [#allocation2], 8
    %504 = vst [vmem:[%s503] sm:$0xff] %v501
    // Predicated region
    $region30: #{tpu_custom_call.1} parent=1 // pred_check
      _
    $region31: #{tpu_custom_call.1} parent=1 // pred_check_branch
      %506 = sbr.rel (0) target = $region33
    $region32: #{tpu_custom_call.1} parent=1 // pred_region
      %s508 = ssub.s32 256, 256
      %509 = vsyncadd [#allocation3], %s508
      %s510 = sshll.u32 [#allocation2], 4
      %s511 = int_to_ptr.vmem [resolvable:$true] %s510
      %516 = dma.vmem_to_hbm [thread:$0]  %s511, 256, %s7, [#allocation3], 128, 128, 8
    $region33: #{tpu_custom_call.1} parent=1 // pred_fallthru
      _
    // Predicated region
    $region34: #{tpu_custom_call.1} parent=1 // pred_check
      _
    $region35: #{tpu_custom_call.1} parent=1 // pred_check_branch
      %518 = sbr.rel (0) target = $region37
    $region36: #{tpu_custom_call.1} parent=1 // pred_region
      %519 = dma.done [#allocation3], 256
    $region37: #{tpu_custom_call.1} parent=1 // pred_fallthru
      _
    %520 = vsyncpa [#allocation3], 1

</llo_original>
